<compile_context>
chip_gen: v6e
topology: v6e:2x2x1
jax: 0.10.0
libtpu: 0.0.40
codegen_flags: <defaults>
</compile_context>

<pallas_src>
import jax
import jax.numpy as jnp
from jax.experimental import pallas as pl
from jax.experimental.pallas import tpu as pltpu

_LANE = 128


def generate_positional_encoding(embed_dim: int,
                                 max_len: int = 100,
                                 dtype=jnp.float32) -> jnp.ndarray:
    """Reproduces PositionalEncoding._generate_positional_encoding exactly.

    Built once at parameter-init time in the model dtype (hoists the per-call
    slice+convert kernel off the hot path).
    """
    pos = jnp.arange(max_len, dtype=jnp.float32)[:, None]          # (max_len, 1)
    idx = jnp.arange(embed_dim, dtype=jnp.float32)[None, :]        # (1, embed_dim)
    enc = pos / (10000.0 ** (idx / embed_dim))                     # (max_len, embed_dim)
    enc = enc.at[:, 0::2].set(jnp.sin(enc[:, 0::2]))
    enc = enc.at[:, 1::2].set(jnp.cos(enc[:, 1::2]))
    return enc[None, :, :].astype(dtype)                           # (1, max_len, embed_dim)


def _pos_enc_add_kernel(x_ref, enc_ref, o_ref):
    # x_ref / o_ref: (TB, TS, 128) tiles; enc_ref: (1, TS, 128) broadcast over
    # the batch block. The enc tile is reused across the inner (batch) grid
    # axis without re-fetch.
    o_ref[...] = x_ref[...] + enc_ref[...]


def positional_encoding_forward(x: jnp.ndarray, encoding: jnp.ndarray) -> jnp.ndarray:
    """x: (B, S, D); encoding: (1, max_len, D). Returns x + encoding[:, :S]."""
    B, S, D = x.shape
    max_len = encoding.shape[1]
    if S > max_len:
        raise ValueError(f"sequence length {S} exceeds max_len {max_len}")

    enc = encoding[:, :S, :]
    if enc.dtype != x.dtype:
        # Fallback only; prefer building the table in the model dtype at init.
        enc = enc.astype(x.dtype)

    # ---- Lane-dense layout: fold (S, D) into rows of 128 lanes. -----------
    if (S * D) % _LANE != 0:
        # Pad the last dim up to a multiple of 128 so the fold is exact and
        # every store is a full-lane (unmasked) vst; slice back afterwards.
        d_pad = pl.cdiv(D, _LANE) * _LANE
        pad = d_pad - D
        x_work = jnp.pad(x, ((0, 0), (0, 0), (0, pad)))
        enc_work = jnp.pad(enc, ((0, 0), (0, 0), (0, pad)))
        d_work = d_pad
    else:
        x_work, enc_work, d_work = x, enc, D

    R = (S * d_work) // _LANE                                      # rows per batch
    xk = x_work.reshape(B, R, _LANE)
    enck = enc_work.reshape(1, R, _LANE)

    # ---- Byte-budgeted tile, rounded to the dtype's sublane packing. ------
    itemsize = jnp.dtype(x.dtype).itemsize
    row_mult = 8 * max(1, 4 // itemsize)          # 8 (f32), 16 (bf16), 32 (int8/fp8)
    target_tile_bytes = 3 * (1 << 19)             # ~1.5 MiB: safe for v5e's 16 MiB
    bytes_per_row = _LANE * itemsize              #   default scoped-VMEM limit.
    max_rows = max(row_mult,
                   (target_tile_bytes // bytes_per_row) // row_mult * row_mult)

    if R <= max_rows:
        # Small per-batch extent: take all rows and widen over the batch axis
        # so each DMA stays large (amortizes per-grid-step overhead).
        TS = R
        tb_cap = max(1, target_tile_bytes // max(1, TS * bytes_per_row))
        TB = 1
        for d in range(1, B + 1):                 # largest divisor of B <= cap
            if B % d == 0 and d <= tb_cap:
                TB = d
    else:
        TS = max_rows
        TB = 1

    n_row_tiles = pl.cdiv(R, TS)
    n_batch_tiles = B // TB

    bytes_accessed = (2 * B + 1) * S * D * itemsize   # x read + out write + enc read

    out = pl.pallas_call(
        _pos_enc_add_kernel,
        out_shape=jax.ShapeDtypeStruct((B, R, _LANE), x.dtype),
        grid_spec=pltpu.PrefetchScalarGridSpec(
            num_scalar_prefetch=0,
            # Row-tile OUTER, batch INNER: enc block index is constant across
            # consecutive steps -> no redundant enc HBM->VMEM copies.
            grid=(n_row_tiles, n_batch_tiles),
            in_specs=[
                pl.BlockSpec((TB, TS, _LANE), lambda t, b: (b, t, 0)),   # x
                pl.BlockSpec((1, TS, _LANE), lambda t, b: (0, t, 0)),    # enc (broadcast)
            ],
            out_specs=pl.BlockSpec((TB, TS, _LANE), lambda t, b: (b, t, 0)),
        ),
        compiler_params=pltpu.CompilerParams(
            dimension_semantics=("parallel", "parallel"),
        ),
        cost_estimate=pl.CostEstimate(
            flops=B * S * D,
            transcendentals=0,
            bytes_accessed=bytes_accessed,
        ),
    )(xk, enck)

    out = out.reshape(B, S, d_work)
    if d_work != D:
        out = out[:, :, :D]
    return out


if __name__ == "__main__":
    B, S, D = 2, 8, 32
    max_len = 100

    key = jax.random.PRNGKey(0)
    x = jax.random.normal(key, (B, S, D), dtype=jnp.float32)

    # Table built once at "init" in the model dtype.
    encoding = generate_positional_encoding(D, max_len, dtype=x.dtype)

    # Pure-JAX reference.
    ref = x + encoding[:, :S, :]

    out = positional_encoding_forward(x, encoding)
    out = jax.block_until_ready(out)

    assert out.shape == (B, S, D)
    assert jnp.allclose(out, ref, atol=1e-6), "mismatch vs reference"

    print("KERNEL_OK")
</pallas_src>

<mosaic_0001>
module attributes {stable_mosaic.version = 11 : i64} {
  func.func @_pos_enc_add_kernel(%arg0: i32, %arg1: i32, %arg2: memref<2x2x128xf32, #tpu.memory_space<vmem>>, %arg3: memref<1x2x128xf32, #tpu.memory_space<vmem>>, %arg4: memref<2x2x128xf32, #tpu.memory_space<vmem>>) attributes {dimension_semantics = [#tpu.dimension_semantics<parallel>, #tpu.dimension_semantics<parallel>], iteration_bounds = array<i64: 1, 1>, scalar_prefetch = 0 : i64, scratch_operands = 0 : i64, tpu.core_type = #tpu.core_type<tc>, window_params = [{transform_indices = @transform_0, window_bounds = array<i64: 2, 2, 128>}, {transform_indices = @transform_1, window_bounds = array<i64: 1, 2, 128>}, {transform_indices = @transform_2, window_bounds = array<i64: 2, 2, 128>}]} {
    %c0 = arith.constant 0 : index
    %c0_0 = arith.constant 0 : index
    %c0_1 = arith.constant 0 : index
    %0 = vector.load %arg2[%c0, %c0_0, %c0_1] : memref<2x2x128xf32, #tpu.memory_space<vmem>>, vector<2x2x128xf32>
    %c0_2 = arith.constant 0 : index
    %c0_3 = arith.constant 0 : index
    %c0_4 = arith.constant 0 : index
    %1 = vector.load %arg3[%c0_2, %c0_3, %c0_4] : memref<1x2x128xf32, #tpu.memory_space<vmem>>, vector<1x2x128xf32>
    %2 = vector.broadcast %1 : vector<1x2x128xf32> to vector<2x2x128xf32>
    %3 = arith.addf %0, %2 : vector<2x2x128xf32>
    %c0_5 = arith.constant 0 : index
    %c0_6 = arith.constant 0 : index
    %c0_7 = arith.constant 0 : index
    %4 = vector.load %arg4[%c0_5, %c0_6, %c0_7] : memref<2x2x128xf32, #tpu.memory_space<vmem>>, vector<2x2x128xf32>
    tpu.vector_store %arg4[%c0_5, %c0_6, %c0_7], %3 {strides = array<i32>} : memref<2x2x128xf32, #tpu.memory_space<vmem>>, vector<2x2x128xf32>,
    return
  }
  func.func @transform_0(%arg0: i32, %arg1: i32) -> (i32, i32, i32) {
    %c0_i32 = arith.constant 0 : i32
    %c0_i32_0 = arith.constant 0 : i32
    return %arg1, %arg0, %c0_i32 : i32, i32, i32
  }
  func.func @transform_1(%arg0: i32, %arg1: i32) -> (i32, i32, i32) {
    %c0_i32 = arith.constant 0 : i32
    %c0_i32_0 = arith.constant 0 : i32
    %c0_i32_1 = arith.constant 0 : i32
    return %c0_i32, %arg0, %c0_i32_0 : i32, i32, i32
  }
  func.func @transform_2(%arg0: i32, %arg1: i32) -> (i32, i32, i32) {
    %c0_i32 = arith.constant 0 : i32
    %c0_i32_0 = arith.constant 0 : i32
    return %arg1, %arg0, %c0_i32 : i32, i32, i32
  }
}

</mosaic_0001>

<llo_original>
// kernel: tpu_custom_call.1
$region0: #{tpu_custom_call.1}
  #allocation0 [shape = 'u32[]', space=smem, size = 0x4, offset = 0x4, fixed_abs, tag = 'smem constant byte address 0x4 - core index']
  #allocation1 [shape = 'u32[144,128]{1,0:T(1,128)}', space=vmem, size = 0x12000, scoped, tag = 'internal scratch']
  %s0 = inlined_call_operand.hbm [shape: f32[2,2,128], index: 0, kind: input, shape index: {}]
  %s1 = inlined_call_operand.hbm [shape: f32[1,2,128], index: 1, kind: input, shape index: {}]
  %s2 = inlined_call_operand.hbm [shape: f32[2,2,128], index: 2, kind: output, shape index: {}]
  %s3 = sld [smem:[#allocation0]]
  $region26: #{tpu_custom_call.1} parent=0
    _
  %s5 = ssub.s32 1, %s3
  %s6 = scalar_select 0, %s5, %s3
  $region1: #{tpu_custom_call.1} parent=0
    #allocation2 [shape = 'u8[2048]{0}', space=vmem, size = 0x800, scoped, tag = 'input window, operand 0, single buffered']
    #allocation3 [shape = 's32[1]{0}', space=sflag, size = 0x4, scoped, tag = 'scoped memory for tpu_custom_call.1']
    #allocation4 [shape = 's32[1]{0}', space=sflag, size = 0x4, scoped, tag = 'scoped memory for tpu_custom_call.1']
    #allocation5 [shape = 'u8[1024]{0}', space=vmem, size = 0x400, scoped, tag = 'input window, operand 1, single buffered']
    #allocation6 [shape = 's32[1]{0}', space=sflag, size = 0x4, scoped, tag = 'scoped memory for tpu_custom_call.1']
    #allocation7 [shape = 'u8[2048]{0}', space=vmem, size = 0x800, scoped, tag = 'output window, operand 0, single buffered']
    %7 = vsyncpa [#allocation3], 0
    %8 = vsyncpa [#allocation6], 0
    %9 = vsyncpa [#allocation4], 0
    // Predicated region
    $region2: #{tpu_custom_call.1} parent=1 // pred_check
      _
    $region3: #{tpu_custom_call.1} parent=1 // pred_check_branch
      %11 = sbr.rel (0) target = $region5
    $region4: #{tpu_custom_call.1} parent=1 // pred_region
      %s13 = ssub.s32 64, 64
      %14 = vsyncadd [#allocation3], %s13
      %s15 = sshll.u32 [#allocation2], 4
      %s16 = int_to_ptr.vmem [resolvable:$true] %s15
      %21 = dma.hbm_to_vmem [thread:$0]  %s0, 64, %s16, [#allocation3], 32, 32, 2
    $region5: #{tpu_custom_call.1} parent=1 // pred_fallthru
      _
    // Predicated region
    $region6: #{tpu_custom_call.1} parent=1 // pred_check
      _
    $region7: #{tpu_custom_call.1} parent=1 // pred_check_branch
      %23 = sbr.rel (0) target = $region9
    $region8: #{tpu_custom_call.1} parent=1 // pred_region
      %s25 = ssub.s32 32, 32
      %26 = vsyncadd [#allocation6], %s25
      %s28 = sshll.u32 [#allocation5], 4
      %s29 = int_to_ptr.vmem [resolvable:$true] %s28
      %31 = dma.hbm_to_vmem [thread:$0]  %s1, 32, %s29, [#allocation6]
    $region9: #{tpu_custom_call.1} parent=1 // pred_fallthru
      _
    // Predicated region
    $region10: #{tpu_custom_call.1} parent=1 // pred_check
      _
    $region11: #{tpu_custom_call.1} parent=1 // pred_check_branch
      %33 = sbr.rel (0) target = $region13
    $region12: #{tpu_custom_call.1} parent=1 // pred_region
      %34 = dma.done [#allocation3], 64
    $region13: #{tpu_custom_call.1} parent=1 // pred_fallthru
      _
    // Predicated region
    $region14: #{tpu_custom_call.1} parent=1 // pred_check
      _
    $region15: #{tpu_custom_call.1} parent=1 // pred_check_branch
      %36 = sbr.rel (0) target = $region17
    $region16: #{tpu_custom_call.1} parent=1 // pred_region
      %37 = dma.done [#allocation6], 32
    $region17: #{tpu_custom_call.1} parent=1 // pred_fallthru
      _
    %v38 = vld [vmem:[#allocation2] sm:$0x3]
    %v39 = vld [vmem:[#allocation2 + $0x2] sm:$0x3]
    %v40 = vld [vmem:[#allocation5] sm:$0x3]
    %v41 = vadd.f32 %v38, %v40
    %v42 = vadd.f32 %v39, %v40
    %43 = vst [vmem:[#allocation7] sm:$0x3] %v41
    %44 = vst [vmem:[#allocation7 + $0x2] sm:$0x3] %v42
    // Predicated region
    $region18: #{tpu_custom_call.1} parent=1 // pred_check
      _
    $region19: #{tpu_custom_call.1} parent=1 // pred_check_branch
      %46 = sbr.rel (0) target = $region21
    $region20: #{tpu_custom_call.1} parent=1 // pred_region
      %s48 = ssub.s32 64, 64
      %49 = vsyncadd [#allocation4], %s48
      %s50 = sshll.u32 [#allocation7], 4
      %s51 = int_to_ptr.vmem [resolvable:$true] %s50
      %56 = dma.vmem_to_hbm [thread:$0]  %s51, 64, %s2, [#allocation4], 32, 32, 2
    $region21: #{tpu_custom_call.1} parent=1 // pred_fallthru
      _
    // Predicated region
    $region22: #{tpu_custom_call.1} parent=1 // pred_check
      _
    $region23: #{tpu_custom_call.1} parent=1 // pred_check_branch
      %58 = sbr.rel (0) target = $region25
    $region24: #{tpu_custom_call.1} parent=1 // pred_region
      %59 = dma.done [#allocation4], 64
    $region25: #{tpu_custom_call.1} parent=1 // pred_fallthru
      _
    %60 = vsyncpa [#allocation3], 1
    %61 = vsyncpa [#allocation6], 1
    %62 = vsyncpa [#allocation4], 1

</llo_original>
